<compile_context>
chip_gen: v5e
topology: v5e:2x2
jax: 0.10.0
libtpu: 0.0.40
codegen_flags: <defaults>
</compile_context>

<pallas_src>
import jax
import jax.numpy as jnp
from jax.experimental import pallas as pl
from jax.experimental.pallas import tpu as pltpu


HEAD_LANES = 128  # lane-dense head output: col 0:2 = action logits, col 2:3 = verifier


def _round_up(x, m):
    return ((x + m - 1) // m) * m


def _gelu(x):
    # tanh-approx GELU in f32 (VPU + EUP)
    return 0.5 * x * (1.0 + jnp.tanh(0.7978845608028654 * (x + 0.044715 * x * x * x)))


# ----------------------------------------------------------------------------
# Fused kernel: residual GELU MLP (K-tiled over FFN dim) + action/verifier heads
# ----------------------------------------------------------------------------
def fused_backbone_heads_kernel(
    x_ref, w1_ref, b1_ref, w2_ref, b2_ref, wh_ref, bh_ref, head_ref, acc_ref
):
    f = pl.program_id(1)

    @pl.when(f == 0)
    def _():
        acc_ref[...] = jnp.zeros_like(acc_ref)

    x = x_ref[...]                                                   # (tm, H) bf16
    h = jnp.dot(x, w1_ref[...], preferred_element_type=jnp.float32)  # (tm, tf) f32
    h = _gelu(h + b1_ref[...])
    acc_ref[...] += jnp.dot(
        h.astype(jnp.bfloat16), w2_ref[...], preferred_element_type=jnp.float32
    )

    @pl.when(f == pl.num_programs(1) - 1)
    def _():
        # bias + residual (f32), then fused lane-dense head projection
        y = acc_ref[...] + b2_ref[...] + x.astype(jnp.float32)       # (tm, H)
        head_ref[...] = (
            jnp.dot(
                y.astype(jnp.bfloat16), wh_ref[...],
                preferred_element_type=jnp.float32,
            )
            + bh_ref[...]
        )


def fused_backbone_heads(x, w1, b1, w2, b2, wh, bh, *, tile_rows, tile_f):
    n, hdim = x.shape
    fdim = w1.shape[1]
    assert n % tile_rows == 0 and fdim % tile_f == 0
    assert hdim % 128 == 0 and tile_f % 128 == 0 and tile_rows % 8 == 0

    grid = (n // tile_rows, fdim // tile_f)  # row axis parallel, FFN axis = reduction
    return pl.pallas_call(
        fused_backbone_heads_kernel,
        out_shape=jax.ShapeDtypeStruct((n, HEAD_LANES), jnp.float32),
        grid_spec=pltpu.PrefetchScalarGridSpec(
            num_scalar_prefetch=0,
            grid=grid,
            in_specs=[
                pl.BlockSpec((tile_rows, hdim), lambda i, f: (i, 0)),   # x (bf16)
                pl.BlockSpec((hdim, tile_f), lambda i, f: (0, f)),      # w1 chunk
                pl.BlockSpec((1, tile_f), lambda i, f: (0, f)),         # b1 chunk
                pl.BlockSpec((tile_f, hdim), lambda i, f: (f, 0)),      # w2 chunk
                pl.BlockSpec((1, hdim), lambda i, f: (0, 0)),           # b2
                pl.BlockSpec((hdim, HEAD_LANES), lambda i, f: (0, 0)),  # fused head W
                pl.BlockSpec((1, HEAD_LANES), lambda i, f: (0, 0)),     # fused head b
            ],
            out_specs=pl.BlockSpec((tile_rows, HEAD_LANES), lambda i, f: (i, 0)),
            scratch_shapes=[pltpu.VMEM((tile_rows, hdim), jnp.float32)],
        ),
        compiler_params=pltpu.CompilerParams(
            dimension_semantics=("parallel", "arbitrary"),
            vmem_limit_bytes=32 << 20,  # safe across v5e/v6e/v7x scoped-VMEM defaults
        ),
    )(
        x,
        w1,
        b1.reshape(1, fdim),
        w2,
        b2.reshape(1, hdim),
        wh,
        bh.reshape(1, HEAD_LANES),
    )


# ----------------------------------------------------------------------------
# Parameter construction (deterministic, synthetic)
# ----------------------------------------------------------------------------
def init_params(key, *, vocab, hidden, ffn, bbox_dim=4):
    ks = jax.random.split(key, 6)
    s = 0.05
    return {
        "embed_table": jax.random.normal(ks[0], (vocab, hidden), jnp.float32) * s,
        "w_bbox": jax.random.normal(ks[1], (bbox_dim, hidden), jnp.float32) * s,
        "b_bbox": jnp.zeros((hidden,), jnp.float32),
        "w1": jax.random.normal(ks[2], (hidden, ffn), jnp.float32) * s,
        "b1": jnp.zeros((ffn,), jnp.float32),
        "w2": jax.random.normal(ks[3], (ffn, hidden), jnp.float32) * s,
        "b2": jnp.zeros((hidden,), jnp.float32),
        "w_act": jax.random.normal(ks[4], (hidden, 2), jnp.float32) * s,
        "b_act": jnp.zeros((2,), jnp.float32),
        "w_ver": jax.random.normal(ks[5], (hidden, 1), jnp.float32) * s,
        "b_ver": jnp.zeros((1,), jnp.float32),
    }


# ----------------------------------------------------------------------------
# Forward pass (mirrors GUIActorModel.forward)
# ----------------------------------------------------------------------------
def gui_actor_forward(
    params, input_ids, attention_mask, bbox, labels=None, *, tile_rows=128, tile_f=256
):
    B, S = input_ids.shape
    H = params["embed_table"].shape[1]
    F = params["w1"].shape[1]

    # ---- backbone glue: embedding lookup + bbox projection + attention mask
    # TODO(synk): backbone/action_head/verifier are injected modules in PyTorch; the
    # backbone is realized here as a synthetic embed+bbox projection + residual MLP.
    tok_emb = params["embed_table"][input_ids]                          # (B, S, H)
    bbox_emb = bbox @ params["w_bbox"] + params["b_bbox"]               # (B, S, H)
    x = (tok_emb + bbox_emb) * attention_mask[..., None].astype(jnp.float32)

    # ---- pad ONCE: flatten tokens, round rows up to the tile size, cast to bf16
    n_tok = B * S
    tile_rows = min(tile_rows, _round_up(n_tok, 8))        # clamp for tiny inputs
    tile_f = min(tile_f, F)
    n_pad = _round_up(n_tok, tile_rows)
    x2d = jnp.pad(x.reshape(n_tok, H), ((0, n_pad - n_tok), (0, 0))).astype(jnp.bfloat16)

    # ---- fold both heads into one lane-dense (H, 128) weight
    wh = (
        jnp.zeros((H, HEAD_LANES), jnp.float32)
        .at[:, 0:2].set(params["w_act"])
        .at[:, 2:3].set(params["w_ver"])
        .astype(jnp.bfloat16)
    )
    bh = (
        jnp.zeros((HEAD_LANES,), jnp.float32)
        .at[0:2].set(params["b_act"])
        .at[2:3].set(params["b_ver"])
    )

    # ---- single fused Pallas kernel (MLP + heads)
    head2d = fused_backbone_heads(
        x2d,
        params["w1"].astype(jnp.bfloat16),
        params["b1"],
        params["w2"].astype(jnp.bfloat16),
        params["b2"],
        wh,
        bh,
        tile_rows=tile_rows,
        tile_f=tile_f,
    )

    # ---- slice off padded rows, drop CLS token, split the 128-lane head output
    head = head2d[:n_tok].reshape(B, S, HEAD_LANES)[:, 1:, :]           # (B, S-1, 128)
    action_logits = head[..., 0:2]                                      # (B, S-1, 2)
    grounding_scores = head[..., 2:3]                                   # (B, S-1, 1)

    # ---- cross-entropy (mean over valid tokens, ignore_index=-100 like PyTorch)
    loss = None
    if labels is not None:
        lab = labels[:, 1:].reshape(-1)
        logits = action_logits.reshape(-1, 2)
        valid = lab != -100
        safe_lab = jnp.clip(jnp.where(valid, lab, 0), 0, 1)
        logz = jax.nn.logsumexp(logits, axis=-1)
        picked = jnp.take_along_axis(logits, safe_lab[:, None], axis=-1)[:, 0]
        per_tok = jnp.where(valid, logz - picked, 0.0)
        denom = jnp.maximum(jnp.sum(valid.astype(jnp.float32)), 1.0)
        loss = jnp.sum(per_tok) / denom

    return {
        "loss": loss,
        "action_logits": action_logits,
        "grounding_scores": grounding_scores,
    }


# ----------------------------------------------------------------------------
if __name__ == "__main__":
    # Small but lane-aligned demo shapes: H, F multiples of 128 so every vector op
    # and matmul uses the full 128-lane vreg / MXU width.
    B, S, H, F, VOCAB = 2, 9, 256, 512, 128   # S=9 -> 8 patch tokens after CLS drop

    key = jax.random.PRNGKey(0)
    k_par, k_ids, k_bbox, k_lab = jax.random.split(key, 4)

    params = init_params(k_par, vocab=VOCAB, hidden=H, ffn=F)

    input_ids = jax.random.randint(k_ids, (B, S), 0, VOCAB, dtype=jnp.int32)
    attention_mask = jnp.ones((B, S), dtype=jnp.int32)
    bbox = jax.random.uniform(k_bbox, (B, S, 4), dtype=jnp.float32)
    labels = jax.random.randint(k_lab, (B, S), 0, 2, dtype=jnp.int32)

    out = gui_actor_forward(params, input_ids, attention_mask, bbox, labels)
    jax.block_until_ready(out)

    assert out["action_logits"].shape == (B, S - 1, 2)
    assert out["grounding_scores"].shape == (B, S - 1, 1)
    assert out["loss"].shape == ()
    assert bool(jnp.isfinite(out["loss"]))
    print("KERNEL_OK")
</pallas_src>

<mosaic_0001>
module attributes {stable_mosaic.version = 11 : i64} {
  func.func @fused_backbone_heads_kernel(%arg0: i32, %arg1: i32, %arg2: memref<24x256xbf16, #tpu.memory_space<vmem>>, %arg3: memref<256x256xbf16, #tpu.memory_space<vmem>>, %arg4: memref<1x256xf32, #tpu.memory_space<vmem>>, %arg5: memref<256x256xbf16, #tpu.memory_space<vmem>>, %arg6: memref<1x256xf32, #tpu.memory_space<vmem>>, %arg7: memref<256x128xbf16, #tpu.memory_space<vmem>>, %arg8: memref<1x128xf32, #tpu.memory_space<vmem>>, %arg9: memref<24x128xf32, #tpu.memory_space<vmem>>, %arg10: memref<24x256xf32, #tpu.memory_space<vmem>>) attributes {dimension_semantics = [#tpu.dimension_semantics<parallel>, #tpu.dimension_semantics<arbitrary>], iteration_bounds = array<i64: 1, 2>, scalar_prefetch = 0 : i64, scratch_operands = 1 : i64, tpu.core_type = #tpu.core_type<tc>, window_params = [{transform_indices = @transform_0, window_bounds = array<i64: 24, 256>}, {transform_indices = @transform_1, window_bounds = array<i64: 256, 256>}, {transform_indices = @transform_2, window_bounds = array<i64: 1, 256>}, {transform_indices = @transform_3, window_bounds = array<i64: 256, 256>}, {pipeline_mode = #tpu.pipeline_mode<synchronous>, transform_indices = @transform_4, window_bounds = array<i64: 1, 256>}, {pipeline_mode = #tpu.pipeline_mode<synchronous>, transform_indices = @transform_5, window_bounds = array<i64: 256, 128>}, {pipeline_mode = #tpu.pipeline_mode<synchronous>, transform_indices = @transform_6, window_bounds = array<i64: 1, 128>}, {transform_indices = @transform_7, window_bounds = array<i64: 24, 128>}]} {
    %c0_i32 = arith.constant 0 : i32
    %0 = arith.cmpi eq, %arg1, %c0_i32 : i32
    %1 = arith.extui %0 : i1 to i32
    %c0_i32_0 = arith.constant 0 : i32
    %2 = arith.cmpi ne, %1, %c0_i32_0 : i32
    scf.if %2 {
      %cst_18 = arith.constant 0.000000e+00 : f32
      %31 = vector.broadcast %cst_18 : f32 to vector<24x256xf32>
      %c0_19 = arith.constant 0 : index
      %c0_20 = arith.constant 0 : index
      %32 = vector.load %arg10[%c0_19, %c0_20] : memref<24x256xf32, #tpu.memory_space<vmem>>, vector<24x256xf32>
      tpu.vector_store %arg10[%c0_19, %c0_20], %31 {strides = array<i32>} : memref<24x256xf32, #tpu.memory_space<vmem>>, vector<24x256xf32>,
    } else {
    }
    %c0 = arith.constant 0 : index
    %c0_1 = arith.constant 0 : index
    %3 = vector.load %arg2[%c0, %c0_1] : memref<24x256xbf16, #tpu.memory_space<vmem>>, vector<24x256xbf16>
    %c0_2 = arith.constant 0 : index
    %c0_3 = arith.constant 0 : index
    %4 = vector.load %arg3[%c0_2, %c0_3] : memref<256x256xbf16, #tpu.memory_space<vmem>>, vector<256x256xbf16>
    %cst = arith.constant dense<0.000000e+00> : vector<24x256xf32>
    %5 = tpu.matmul %3, %4, %cst {dimension_numbers = #tpu.dot_dimension_numbers<[1], [0], [0], [1], [0, 0, 1, 1], [], []>} : vector<24x256xbf16>, vector<256x256xbf16>, vector<24x256xf32> -> vector<24x256xf32>
    %c0_4 = arith.constant 0 : index
    %c0_5 = arith.constant 0 : index
    %6 = vector.load %arg4[%c0_4, %c0_5] : memref<1x256xf32, #tpu.memory_space<vmem>>, vector<1x256xf32>
    %7 = vector.broadcast %6 : vector<1x256xf32> to vector<24x256xf32>
    %8 = arith.addf %5, %7 : vector<24x256xf32>
    %cst_6 = arith.constant 5.000000e-01 : f32
    %9 = vector.broadcast %cst_6 : f32 to vector<24x256xf32>
    %10 = arith.mulf %9, %8 : vector<24x256xf32>
    %cst_7 = arith.constant 4.471500e-02 : f32
    %11 = vector.broadcast %cst_7 : f32 to vector<24x256xf32>
    %12 = arith.mulf %11, %8 : vector<24x256xf32>
    %13 = arith.mulf %12, %8 : vector<24x256xf32>
    %14 = arith.mulf %13, %8 : vector<24x256xf32>
    %15 = arith.addf %8, %14 : vector<24x256xf32>
    %cst_8 = arith.constant 0.797884583 : f32
    %16 = vector.broadcast %cst_8 : f32 to vector<24x256xf32>
    %17 = arith.mulf %16, %15 : vector<24x256xf32>
    %18 = math.tanh %17 : vector<24x256xf32>
    %cst_9 = arith.constant 1.000000e+00 : f32
    %19 = vector.broadcast %cst_9 : f32 to vector<24x256xf32>
    %20 = arith.addf %19, %18 : vector<24x256xf32>
    %21 = arith.mulf %10, %20 : vector<24x256xf32>
    %c0_10 = arith.constant 0 : index
    %c0_11 = arith.constant 0 : index
    %22 = vector.load %arg10[%c0_10, %c0_11] : memref<24x256xf32, #tpu.memory_space<vmem>>, vector<24x256xf32>
    %23 = arith.truncf %21 : vector<24x256xf32> to vector<24x256xbf16>
    %c0_12 = arith.constant 0 : index
    %c0_13 = arith.constant 0 : index
    %24 = vector.load %arg5[%c0_12, %c0_13] : memref<256x256xbf16, #tpu.memory_space<vmem>>, vector<256x256xbf16>
    %cst_14 = arith.constant dense<0.000000e+00> : vector<24x256xf32>
    %25 = tpu.matmul %23, %24, %cst_14 {dimension_numbers = #tpu.dot_dimension_numbers<[1], [0], [0], [1], [0, 0, 1, 1], [], []>} : vector<24x256xbf16>, vector<256x256xbf16>, vector<24x256xf32> -> vector<24x256xf32>
    %26 = arith.addf %22, %25 : vector<24x256xf32>
    %c0_15 = arith.constant 0 : index
    %c0_16 = arith.constant 0 : index
    %27 = vector.load %arg10[%c0_15, %c0_16] : memref<24x256xf32, #tpu.memory_space<vmem>>, vector<24x256xf32>
    tpu.vector_store %arg10[%c0_15, %c0_16], %26 {strides = array<i32>} : memref<24x256xf32, #tpu.memory_space<vmem>>, vector<24x256xf32>,
    %c1_i32 = arith.constant 1 : i32
    %28 = arith.cmpi eq, %arg1, %c1_i32 : i32
    %29 = arith.extui %28 : i1 to i32
    %c0_i32_17 = arith.constant 0 : i32
    %30 = arith.cmpi ne, %29, %c0_i32_17 : i32
    scf.if %30 {
      %c0_18 = arith.constant 0 : index
      %c0_19 = arith.constant 0 : index
      %31 = vector.load %arg10[%c0_18, %c0_19] : memref<24x256xf32, #tpu.memory_space<vmem>>, vector<24x256xf32>
      %c0_20 = arith.constant 0 : index
      %c0_21 = arith.constant 0 : index
      %32 = vector.load %arg6[%c0_20, %c0_21] : memref<1x256xf32, #tpu.memory_space<vmem>>, vector<1x256xf32>
      %33 = vector.broadcast %32 : vector<1x256xf32> to vector<24x256xf32>
      %34 = arith.addf %31, %33 : vector<24x256xf32>
      %35 = arith.extf %3 : vector<24x256xbf16> to vector<24x256xf32>
      %36 = arith.addf %34, %35 : vector<24x256xf32>
      %37 = arith.truncf %36 : vector<24x256xf32> to vector<24x256xbf16>
      %c0_22 = arith.constant 0 : index
      %c0_23 = arith.constant 0 : index
      %38 = vector.load %arg7[%c0_22, %c0_23] : memref<256x128xbf16, #tpu.memory_space<vmem>>, vector<256x128xbf16>
      %cst_24 = arith.constant dense<0.000000e+00> : vector<24x128xf32>
      %39 = tpu.matmul %37, %38, %cst_24 {dimension_numbers = #tpu.dot_dimension_numbers<[1], [0], [0], [1], [0, 0, 1, 1], [], []>} : vector<24x256xbf16>, vector<256x128xbf16>, vector<24x128xf32> -> vector<24x128xf32>
      %c0_25 = arith.constant 0 : index
      %c0_26 = arith.constant 0 : index
      %40 = vector.load %arg8[%c0_25, %c0_26] : memref<1x128xf32, #tpu.memory_space<vmem>>, vector<1x128xf32>
      %41 = vector.broadcast %40 : vector<1x128xf32> to vector<24x128xf32>
      %42 = arith.addf %39, %41 : vector<24x128xf32>
      %c0_27 = arith.constant 0 : index
      %c0_28 = arith.constant 0 : index
      %43 = vector.load %arg9[%c0_27, %c0_28] : memref<24x128xf32, #tpu.memory_space<vmem>>, vector<24x128xf32>
      tpu.vector_store %arg9[%c0_27, %c0_28], %42 {strides = array<i32>} : memref<24x128xf32, #tpu.memory_space<vmem>>, vector<24x128xf32>,
    } else {
    }
    return
  }
  func.func @transform_0(%arg0: i32, %arg1: i32) -> (i32, i32) {
    %c0_i32 = arith.constant 0 : i32
    %c0_i32_0 = arith.constant 0 : i32
    return %arg0, %c0_i32 : i32, i32
  }
  func.func @transform_1(%arg0: i32, %arg1: i32) -> (i32, i32) {
    %c0_i32 = arith.constant 0 : i32
    %c0_i32_0 = arith.constant 0 : i32
    return %c0_i32, %arg1 : i32, i32
  }
  func.func @transform_2(%arg0: i32, %arg1: i32) -> (i32, i32) {
    %c0_i32 = arith.constant 0 : i32
    %c0_i32_0 = arith.constant 0 : i32
    return %c0_i32, %arg1 : i32, i32
  }
  func.func @transform_3(%arg0: i32, %arg1: i32) -> (i32, i32) {
    %c0_i32 = arith.constant 0 : i32
    %c0_i32_0 = arith.constant 0 : i32
    return %arg1, %c0_i32 : i32, i32
  }
  func.func @transform_4(%arg0: i32, %arg1: i32) -> (i32, i32) {
    %c0_i32 = arith.constant 0 : i32
    %c0_i32_0 = arith.constant 0 : i32
    %c0_i32_1 = arith.constant 0 : i32
    return %c0_i32, %c0_i32_0 : i32, i32
  }
  func.func @transform_5(%arg0: i32, %arg1: i32) -> (i32, i32) {
    %c0_i32 = arith.constant 0 : i32
    %c0_i32_0 = arith.constant 0 : i32
    %c0_i32_1 = arith.constant 0 : i32
    return %c0_i32, %c0_i32_0 : i32, i32
  }
  func.func @transform_6(%arg0: i32, %arg1: i32) -> (i32, i32) {
    %c0_i32 = arith.constant 0 : i32
    %c0_i32_0 = arith.constant 0 : i32
    %c0_i32_1 = arith.constant 0 : i32
    return %c0_i32, %c0_i32_0 : i32, i32
  }
  func.func @transform_7(%arg0: i32, %arg1: i32) -> (i32, i32) {
    %c0_i32 = arith.constant 0 : i32
    %c0_i32_0 = arith.constant 0 : i32
    return %arg0, %c0_i32 : i32, i32
  }
}

</mosaic_0001>

<llo_original>
// kernel: tpu_custom_call.1
$region0: #{tpu_custom_call.1}
  #allocation0 [shape = 'u32[]', space=smem, size = 0x4, offset = 0x4, fixed_abs, tag = 'smem constant byte address 0x4 - core index']
  #allocation1 [shape = 'u32[72,128]{1,0:T(1,128)}', space=vmem, size = 0x9000, scoped, tag = 'internal scratch']
  #allocation2 [shape = 'f32[24,256]{1,0:T(8,128)}', space=vmem, size = 0x6000, scoped, tag = 'scratch operand']
  %s0 = inlined_call_operand.hbm [shape: bf16[24,256], index: 0, kind: input, shape index: {}]
  %s1 = inlined_call_operand.hbm [shape: bf16[256,512], index: 1, kind: input, shape index: {}]
  %s2 = inlined_call_operand.hbm [shape: f32[1,512], index: 2, kind: input, shape index: {}]
  %s3 = inlined_call_operand.hbm [shape: bf16[512,256], index: 3, kind: input, shape index: {}]
  %s4 = inlined_call_operand.vmem [shape: f32[1,256], index: 4, kind: input, shape index: {}]
  %s5 = inlined_call_operand.hbm [shape: bf16[256,128], index: 5, kind: input, shape index: {}]
  %s6 = inlined_call_operand.vmem [shape: f32[1,128], index: 6, kind: input, shape index: {}]
  %s7 = inlined_call_operand.hbm [shape: f32[24,128], index: 7, kind: output, shape index: {}]
  %s8 = sld [smem:[#allocation0]]
  $region89: #{tpu_custom_call.1} parent=0
    _
  %s10 = ssub.s32 1, %s8
  %s11 = scalar_select 0, %s10, %s8
  $region1: #{tpu_custom_call.1} parent=0
    #allocation3 [shape = 'u8[12288]{0}', space=vmem, size = 0x3000, scoped, tag = 'input window, operand 0, single buffered']
    #allocation4 [shape = 's32[2]{0}', space=sflag, size = 0x8, scoped, tag = 'scoped memory for tpu_custom_call.1']
    #allocation5 [shape = 's32[2]{0}', space=sflag, size = 0x8, scoped, tag = 'scoped memory for tpu_custom_call.1']
    #allocation6 [shape = 'u8[262144]{0}', space=vmem, size = 0x40000, scoped, tag = 'input window, operand 1']
    #allocation7 [shape = 's32[2]{0}', space=sflag, size = 0x8, scoped, tag = 'scoped memory for tpu_custom_call.1']
    #allocation8 [shape = 'u8[2048]{0}', space=vmem, size = 0x800, scoped, tag = 'input window, operand 2']
    #allocation9 [shape = 'u8[262144]{0}', space=vmem, size = 0x40000, scoped, tag = 'input window, operand 3']
    #allocation10 [shape = 's32[2]{0}', space=sflag, size = 0x8, scoped, tag = 'scoped memory for tpu_custom_call.1']
    #allocation11 [shape = 'u8[65536]{0}', space=vmem, size = 0x10000, scoped, tag = 'input window, operand 5, single buffered']
    #allocation12 [shape = 'u8[12288]{0}', space=vmem, size = 0x3000, scoped, tag = 'output window, operand 0, single buffered']
    %12 = vsyncpa [#allocation4], 0
    %13 = vsyncpa [#allocation7], 0
    %s14 = scalar_lea.sflag [#allocation7], 1
    %15 = vsyncpa %s14, 0
    %16 = vsyncpa [#allocation10], 0
    %s17 = scalar_lea.sflag [#allocation10], 1
    %18 = vsyncpa %s17, 0
    %19 = vsyncpa [#allocation5], 0
    loop: start=0, step=1, limit=4
    $region2: #{tpu_custom_call.1} parent=1 // loop_pre_header
      _
    $region3: #{tpu_custom_call.1} parent=1 // loop_header
      %s21 = sphi 0, %s25
      %p22 = scmp.ge.s32.totalorder %s21, 4
      %s28 = sphi 0, %s40
      %s29 = sphi 0, %s36
      %s30 = sphi 0, %s28
      %s31 = sphi 0, %s29
      %s32 = sphi 0, %s30
      %s33 = sphi 0, %s31
      %s43 = sphi 0, %s45
      %s46 = sphi 0, %s43
      %s47 = sphi 0, %s46
      %s63 = sphi 0, %s47
      %s69 = sphi 0, %s71
      %s72 = sphi 0, %s69
      %s73 = sphi 0, %s72
      %s89 = sphi 0, %s73
      %s95 = sphi 0, %s97
      %s98 = sphi 0, %s95
      %s99 = sphi 0, %s98
      %s115 = sphi 0, %s99
      %s121 = sphi 0, %s123
      %s124 = sphi 0, %s121
      %s125 = sphi 0, %s124
      %s141 = sphi 0, %s125
      %s145 = sphi 0, %s145
      %s147 = sphi 0, %s145
      %s148 = sphi 0, %s147
      %s162 = sphi 0, %s148
      %s166 = sphi 0, %s166
      %s168 = sphi 0, %s166
      %s169 = sphi 0, %s168
      %s183 = sphi 0, %s169
      %s187 = sphi 0, %s187
      %s189 = sphi 0, %s187
      %s190 = sphi 0, %s189
      %s204 = sphi 0, %s190
      %s210 = sphi 0, %s212
      %s213 = sphi 0, %s210
      %s214 = sphi 0, %s213
      %s230 = sphi 0, %s214
    $region4: #{tpu_custom_call.1} parent=1 // loop_header_branch
      %24 = sbr.rel (%p22) target = $region8
    $region5: #{tpu_custom_call.1} parent=1 // loop_body
      %s26 = ssub.s32 %s21, 1
      %s27 = ssub.s32 %s21, 2
      %s34 = sadd.s32 1, %s29
      %p35 = scmp.ge.s32.totalorder %s34, 2
      %s36 = scalar_select %p35, 0, %s34
      %s37 = sadd.s32 1, %s28
      %s38 = scalar_select %p35, %s37, %s28
      %p39 = scmp.ge.s32.totalorder %s38, 1
      %s40 = scalar_select %p39, 0, %s38
      %s41 = ssub.s32 %s28, %s40
      %p42 = scmp.eq.s32.totalorder %s41, 0
      %s44 = sadd.s32 %s43, 1
      %s45 = scalar_select %p42, %s43, %s44
      %p48 = pneg %p42
      %p49 = scmp.eq.s32.totalorder %s21, 1
      %p50 = por %p48, %p49
      %p51 = scmp.ne.s32.totalorder %s43, %s46
      %p52 = scmp.eq.s32.totalorder %s21, 0
      %p53 = por %p51, %p52
      %p54 = scmp.ne.s32.totalorder %s43, %s46
      %p55 = scmp.eq.s32.totalorder %s26, 1
      %p56 = por %p54, %p55
      %p57 = scmp.ne.s32.totalorder %s46, %s47
      %p58 = scmp.eq.s32.totalorder %s26, 0
      %p59 = por %p57, %p58
      %p60 = scmp.ne.s32.totalorder %s46, %s47
      %p61 = scmp.eq.s32.totalorder %s27, 1
      %p62 = por %p60, %p61
      %p64 = scmp.ne.s32.totalorder %s47, %s63
      %p65 = scmp.eq.s32.totalorder %s27, 0
      %p66 = por %p64, %p65
      %s67 = ssub.s32 %s29, %s36
      %p68 = scmp.eq.s32.totalorder %s67, 0
      %s70 = sadd.s32 %s69, 1
      %s71 = scalar_select %p68, %s69, %s70
      %p74 = pneg %p68
      %p75 = scmp.eq.s32.totalorder %s21, 1
      %p76 = por %p74, %p75
      %p77 = scmp.ne.s32.totalorder %s69, %s72
      %p78 = scmp.eq.s32.totalorder %s21, 0
      %p79 = por %p77, %p78
      %p80 = scmp.ne.s32.totalorder %s69, %s72
      %p81 = scmp.eq.s32.totalorder %s26, 1
      %p82 = por %p80, %p81
      %p83 = scmp.ne.s32.totalorder %s72, %s73
      %p84 = scmp.eq.s32.totalorder %s26, 0
      %p85 = por %p83, %p84
      %p86 = scmp.ne.s32.totalorder %s72, %s73
      %p87 = scmp.eq.s32.totalorder %s27, 1
      %p88 = por %p86, %p87
      %p90 = scmp.ne.s32.totalorder %s73, %s89
      %p91 = scmp.eq.s32.totalorder %s27, 0
      %p92 = por %p90, %p91
      %s93 = ssub.s32 %s29, %s36
      %p94 = scmp.eq.s32.totalorder %s93, 0
      %s96 = sadd.s32 %s95, 1
      %s97 = scalar_select %p94, %s95, %s96
      %p100 = pneg %p94
      %p101 = scmp.eq.s32.totalorder %s21, 1
      %p102 = por %p100, %p101
      %p103 = scmp.ne.s32.totalorder %s95, %s98
      %p104 = scmp.eq.s32.totalorder %s21, 0
      %p105 = por %p103, %p104
      %p106 = scmp.ne.s32.totalorder %s95, %s98
      %p107 = scmp.eq.s32.totalorder %s26, 1
      %p108 = por %p106, %p107
      %p109 = scmp.ne.s32.totalorder %s98, %s99
      %p110 = scmp.eq.s32.totalorder %s26, 0
      %p111 = por %p109, %p110
      %p112 = scmp.ne.s32.totalorder %s98, %s99
      %p113 = scmp.eq.s32.totalorder %s27, 1
      %p114 = por %p112, %p113
      %p116 = scmp.ne.s32.totalorder %s99, %s115
      %p117 = scmp.eq.s32.totalorder %s27, 0
      %p118 = por %p116, %p117
      %s119 = ssub.s32 %s29, %s36
      %p120 = scmp.eq.s32.totalorder %s119, 0
      %s122 = sadd.s32 %s121, 1
      %s123 = scalar_select %p120, %s121, %s122
      %p126 = pneg %p120
      %p127 = scmp.eq.s32.totalorder %s21, 1
      %p128 = por %p126, %p127
      %p129 = scmp.ne.s32.totalorder %s121, %s124
      %p130 = scmp.eq.s32.totalorder %s21, 0
      %p131 = por %p129, %p130
      %p132 = scmp.ne.s32.totalorder %s121, %s124
      %p133 = scmp.eq.s32.totalorder %s26, 1
      %p134 = por %p132, %p133
      %p135 = scmp.ne.s32.totalorder %s124, %s125
      %p136 = scmp.eq.s32.totalorder %s26, 0
      %p137 = por %p135, %p136
      %p138 = scmp.ne.s32.totalorder %s124, %s125
      %p139 = scmp.eq.s32.totalorder %s27, 1
      %p140 = por %p138, %p139
      %p142 = scmp.ne.s32.totalorder %s125, %s141
      %p143 = scmp.eq.s32.totalorder %s27, 0
      %p144 = por %p142, %p143
      %s146 = sadd.s32 %s145, 1
      %p149 = scmp.eq.s32.totalorder %s21, 1
      %p150 = scmp.ne.s32.totalorder %s145, %s147
      %p151 = scmp.eq.s32.totalorder %s21, 0
      %p152 = por %p150, %p151
      %p153 = scmp.ne.s32.totalorder %s145, %s147
      %p154 = scmp.eq.s32.totalorder %s26, 1
      %p155 = por %p153, %p154
      %p156 = scmp.ne.s32.totalorder %s147, %s148
      %p157 = scmp.eq.s32.totalorder %s26, 0
      %p158 = por %p156, %p157
      %p159 = scmp.ne.s32.totalorder %s147, %s148
      %p160 = scmp.eq.s32.totalorder %s27, 1
      %p161 = por %p159, %p160
      %p163 = scmp.ne.s32.totalorder %s148, %s162
      %p164 = scmp.eq.s32.totalorder %s27, 0
      %p165 = por %p163, %p164
      %s167 = sadd.s32 %s166, 1
      %p170 = scmp.eq.s32.totalorder %s21, 1
      %p171 = scmp.ne.s32.totalorder %s166, %s168
      %p172 = scmp.eq.s32.totalorder %s21, 0
      %p173 = por %p171, %p172
      %p174 = scmp.ne.s32.totalorder %s166, %s168
      %p175 = scmp.eq.s32.totalorder %s26, 1
      %p176 = por %p174, %p175
      %p177 = scmp.ne.s32.totalorder %s168, %s169
      %p178 = scmp.eq.s32.totalorder %s26, 0
      %p179 = por %p177, %p178
      %p180 = scmp.ne.s32.totalorder %s168, %s169
      %p181 = scmp.eq.s32.totalorder %s27, 1
      %p182 = por %p180, %p181
      %p184 = scmp.ne.s32.totalorder %s169, %s183
      %p185 = scmp.eq.s32.totalorder %s27, 0
      %p186 = por %p184, %p185
      %s188 = sadd.s32 %s187, 1
      %p191 = scmp.eq.s32.totalorder %s21, 1
      %p192 = scmp.ne.s32.totalorder %s187, %s189
      %p193 = scmp.eq.s32.totalorder %s21, 0
      %p194 = por %p192, %p193
      %p195 = scmp.ne.s32.totalorder %s187, %s189
      %p196 = scmp.eq.s32.totalorder %s26, 1
      %p197 = por %p195, %p196
      %p198 = scmp.ne.s32.totalorder %s189, %s190
      %p199 = scmp.eq.s32.totalorder %s26, 0
      %p200 = por %p198, %p199
      %p201 = scmp.ne.s32.totalorder %s189, %s190
      %p202 = scmp.eq.s32.totalorder %s27, 1
      %p203 = por %p201, %p202
      %p205 = scmp.ne.s32.totalorder %s190, %s204
      %p206 = scmp.eq.s32.totalorder %s27, 0
      %p207 = por %p205, %p206
      %s208 = ssub.s32 %s28, %s40
      %p209 = scmp.eq.s32.totalorder %s208, 0
      %s211 = sadd.s32 %s210, 1
      %s212 = scalar_select %p209, %s210, %s211
      %p215 = pneg %p209
      %p216 = scmp.eq.s32.totalorder %s21, 1
      %p217 = por %p215, %p216
      %p218 = scmp.ne.s32.totalorder %s210, %s213
      %p219 = scmp.eq.s32.totalorder %s21, 0
      %p220 = por %p218, %p219
      %p221 = scmp.ne.s32.totalorder %s210, %s213
      %p222 = scmp.eq.s32.totalorder %s26, 1
      %p223 = por %p221, %p222
      %p224 = scmp.ne.s32.totalorder %s213, %s214
      %p225 = scmp.eq.s32.totalorder %s26, 0
      %p226 = por %p224, %p225
      %p227 = scmp.ne.s32.totalorder %s213, %s214
      %p228 = scmp.eq.s32.totalorder %s27, 1
      %p229 = por %p227, %p228
      %p231 = scmp.ne.s32.totalorder %s214, %s230
      %p232 = scmp.eq.s32.totalorder %s27, 0
      %p233 = por %p231, %p232
      %p234 = scmp.le.s32.totalorder 1, %s21
      %p235 = scmp.lt.s32.totalorder %s21, 3
      %p236 = pnand %p234, %p235
      %p237 = pneg %p236
      // Predicated region
      $region9: #{tpu_custom_call.1} parent=5 // pred_check
        _
      $region10: #{tpu_custom_call.1} parent=5 // pred_check_branch
        %239 = sbr.rel (%p236) target = $region12
      $region11: #{tpu_custom_call.1} parent=5 // pred_region
        %s240 = ssub.s32 %s21, 1
        // Predicated region
        $region13: #{tpu_custom_call.1} parent=11 // pred_check
          %p241 = pneg %p59
        $region14: #{tpu_custom_call.1} parent=11 // pred_check_branch
          %243 = sbr.rel (%p241) target = $region16
        $region15: #{tpu_custom_call.1} parent=11 // pred_region
          %s244 = smul.u32 3, %s30
          %246 = vsyncadd [#allocation4], 0
          %s247 = smul.addr %s244, 2
          %s248 = smul.addr %s247, 4
          %s249 = scalar_lea.hbm %s0, %s248
          %s250 = sshll.u32 %s249, 4
          %s251 = int_to_ptr.hbm [resolvable:$true] %s250
          %s252 = sshll.u32 [#allocation3], 4
          %s253 = int_to_ptr.vmem [resolvable:$true] %s252
          %258 = dma.hbm_to_vmem [thread:$0]  %s251, 384, %s253, [#allocation4], 128, 128, 8
        $region16: #{tpu_custom_call.1} parent=11 // pred_fallthru
          _
        // Predicated region
        $region17: #{tpu_custom_call.1} parent=11 // pred_check
          %p259 = pneg %p158
        $region18: #{tpu_custom_call.1} parent=11 // pred_check_branch
          %261 = sbr.rel (%p259) target = $region20
        $region19: #{tpu_custom_call.1} parent=11 // pred_region
          _
        $region20: #{tpu_custom_call.1} parent=11 // pred_fallthru
          _
        // Predicated region
        $region21: #{tpu_custom_call.1} parent=11 // pred_check
          %p262 = pneg %p179
        $region22: #{tpu_custom_call.1} parent=11 // pred_check_branch
          %264 = sbr.rel (%p262) target = $region24
        $region23: #{tpu_custom_call.1} parent=11 // pred_region
          %266 = vsyncadd [#allocation10], 0
          %s267 = sshll.u32 %s5, 4
          %s268 = int_to_ptr.hbm [resolvable:$true] %s267
          %s269 = sshll.u32 [#allocation11], 4
          %s270 = int_to_ptr.vmem [resolvable:$true] %s269
          %275 = dma.hbm_to_vmem [thread:$0]  %s268, 2048, %s270, [#allocation10], 64, 64, 4
        $region24: #{tpu_custom_call.1} parent=11 // pred_fallthru
          _
        // Predicated region
        $region25: #{tpu_custom_call.1} parent=11 // pred_check
          %p276 = pneg %p200
        $region26: #{tpu_custom_call.1} parent=11 // pred_check_branch
          %278 = sbr.rel (%p276) target = $region28
        $region27: #{tpu_custom_call.1} parent=11 // pred_region
          _
        $region28: #{tpu_custom_call.1} parent=11 // pred_fallthru
          _
      $region12: #{tpu_custom_call.1} parent=5 // pred_fallthru
        _
      %p279 = scmp.lt.s32.totalorder %s21, 2
      // Predicated region
      $region29: #{tpu_custom_call.1} parent=5 // pred_check
        %p280 = pneg %p279
      $region30: #{tpu_custom_call.1} parent=5 // pred_check_branch
        %282 = sbr.rel (%p280) target = $region32
      $region31: #{tpu_custom_call.1} parent=5 // pred_region
        // Predicated region
        $region33: #{tpu_custom_call.1} parent=31 // pred_check
          %p283 = pneg %p79
        $region34: #{tpu_custom_call.1} parent=31 // pred_check_branch
          %285 = sbr.rel (%p283) target = $region36
        $region35: #{tpu_custom_call.1} parent=31 // pred_region
          %s286 = sand.u32 %s21, 1
          %s287 = scalar_lea.sflag [#allocation7], %s286
          %s288 = sand.u32 %s69, 1
          %s289 = smul.addr %s288, 256
          %s290 = scalar_lea.vmem [#allocation6], %s289
          %s291 = smul.u32 2, %s29
          %293 = vsyncadd %s287, 0
          %s294 = smul.addr %s291, 4
          %s295 = scalar_lea.hbm %s1, %s294
          %s296 = sshll.u32 %s295, 4
          %s297 = int_to_ptr.hbm [resolvable:$true] %s296
          %s298 = sshll.u32 %s290, 4
          %s299 = int_to_ptr.vmem [resolvable:$true] %s298
          %304 = dma.hbm_to_vmem [thread:$0]  %s297, 4096, %s299, %s287, 256, 128, 8
        $region36: #{tpu_custom_call.1} parent=31 // pred_fallthru
          _
        // Predicated region
        $region37: #{tpu_custom_call.1} parent=31 // pred_check
          %p305 = pneg %p105
        $region38: #{tpu_custom_call.1} parent=31 // pred_check_branch
          %307 = sbr.rel (%p305) target = $region40
        $region39: #{tpu_custom_call.1} parent=31 // pred_region
          %s308 = sand.u32 %s21, 1
          %s309 = scalar_lea.sflag [#allocation7], %s308
          %s310 = sand.u32 %s95, 1
          %s311 = smul.addr %s310, 2
          %s312 = scalar_lea.vmem [#allocation8], %s311
          %s313 = smul.u32 2, %s29
          %315 = vsyncadd %s309, 0
          %s316 = scalar_lea.hbm %s2, %s313
          %s318 = sshll.u32 %s316, 4
          %s319 = int_to_ptr.hbm [resolvable:$true] %s318
          %s320 = sshll.u32 %s312, 4
          %s321 = int_to_ptr.vmem [resolvable:$true] %s320
          %323 = dma.hbm_to_vmem [thread:$0]  %s319, 32, %s321, %s309
        $region40: #{tpu_custom_call.1} parent=31 // pred_fallthru
          _
        // Predicated region
        $region41: #{tpu_custom_call.1} parent=31 // pred_check
          %p324 = pneg %p131
        $region42: #{tpu_custom_call.1} parent=31 // pred_check_branch
          %326 = sbr.rel (%p324) target = $region44
        $region43: #{tpu_custom_call.1} parent=31 // pred_region
          %s327 = sand.u32 %s21, 1
          %s328 = scalar_lea.sflag [#allocation10], %s327
          %s329 = sand.u32 %s121, 1
          %s330 = smul.addr %s329, 256
          %s331 = scalar_lea.vmem [#allocation9], %s330
          %s332 = smul.u32 32, %s29
          %334 = vsyncadd %s328, 0
          %s335 = smul.addr %s332, 2
          %s336 = smul.addr %s335, 4
          %s337 = scalar_lea.hbm %s3, %s336
          %s338 = sshll.u32 %s337, 4
          %s339 = int_to_ptr.hbm [resolvable:$true] %s338
          %s340 = sshll.u32 %s331, 4
          %s341 = int_to_ptr.vmem [resolvable:$true] %s340
          %346 = dma.hbm_to_vmem [thread:$0]  %s339, 4096, %s341, %s328, 128, 128, 8
        $region44: #{tpu_custom_call.1} parent=31 // pred_fallthru
          _
      $region32: #{tpu_custom_call.1} parent=5 // pred_fallthru
        _
      %p347 = scmp.le.s32.totalorder 1, %s21
      %p348 = scmp.lt.s32.totalorder %s21, 3
      %p349 = pnand %p347, %p348
      %p350 = pneg %p349
      // Predicated region
      $region45: #{tpu_custom_call.1} parent=5 // pred_check
        _
      $region46: #{tpu_custom_call.1} parent=5 // pred_check_branch
        %352 = sbr.rel (%p349) target = $region48
      $region47: #{tpu_custom_call.1} parent=5 // pred_region
        %s353 = ssub.s32 %s21, 1
        // Predicated region
        $region49: #{tpu_custom_call.1} parent=47 // pred_check
          %p354 = pneg %p59
        $region50: #{tpu_custom_call.1} parent=47 // pred_check_branch
          %356 = sbr.rel (%p354) target = $region52
        $region51: #{tpu_custom_call.1} parent=47 // pred_region
          %358 = dma.done [#allocation4], 384
        $region52: #{tpu_custom_call.1} parent=47 // pred_fallthru
          _
        %s359 = sand.u32 %s26, 1
        %s360 = scalar_lea.sflag [#allocation7], %s359
        %s361 = sand.u32 %s72, 1
        %s362 = smul.addr %s361, 256
        %s363 = scalar_lea.vmem [#allocation6], %s362
        // Predicated region
        $region53: #{tpu_custom_call.1} parent=47 // pred_check
          %p364 = pneg %p85
        $region54: #{tpu_custom_call.1} parent=47 // pred_check_branch
          %366 = sbr.rel (%p364) target = $region56
        $region55: #{tpu_custom_call.1} parent=47 // pred_region
          %368 = dma.done %s360, 4096
        $region56: #{tpu_custom_call.1} parent=47 // pred_fallthru
          _
        %s369 = sand.u32 %s26, 1
        %s370 = scalar_lea.sflag [#allocation7], %s369
        %s371 = sand.u32 %s98, 1
        %s372 = smul.addr %s371, 2
        %s373 = scalar_lea.vmem [#allocation8], %s372
        // Predicated region
        $region57: #{tpu_custom_call.1} parent=47 // pred_check
          %p374 = pneg %p111
        $region58: #{tpu_custom_call.1} parent=47 // pred_check_branch
          %376 = sbr.rel (%p374) target = $region60
        $region59: #{tpu_custom_call.1} parent=47 // pred_region
          %378 = dma.done %s370, 32
        $region60: #{tpu_custom_call.1} parent=47 // pred_fallthru
          _
        %s379 = sand.u32 %s26, 1
        %s380 = scalar_lea.sflag [#allocation10], %s379
        %s381 = sand.u32 %s124, 1
        %s382 = smul.addr %s381, 256
        %s383 = scalar_lea.vmem [#allocation9], %s382
        // Predicated region
        $region61: #{tpu_custom_call.1} parent=47 // pred_check
          %p384 = pneg %p137
        $region62: #{tpu_custom_call.1} parent=47 // pred_check_branch
          %386 = sbr.rel (%p384) target = $region64
        $region63: #{tpu_custom_call.1} parent=47 // pred_region
          %388 = dma.done %s380, 4096
        $region64: #{tpu_custom_call.1} parent=47 // pred_fallthru
          _
        // Predicated region
        $region65: #{tpu_custom_call.1} parent=47 // pred_check
          %p389 = pneg %p179
        $region66: #{tpu_custom_call.1} parent=47 // pred_check_branch
          %391 = sbr.rel (%p389) target = $region68
        $region67: #{tpu_custom_call.1} parent=47 // pred_region
          %393 = dma.done [#allocation10], 2048
        $region68: #{tpu_custom_call.1} parent=47 // pred_fallthru
          _
        %p394 = pneg %p59
        %p395 = pneg %p56
        %s396 = sand.u32 %s26, 1
        %s397 = scalar_lea.sflag [#allocation7], %s396
        %s398 = sand.u32 %s72, 1
        %s399 = smul.addr %s398, 256
        %s400 = scalar_lea.vmem [#allocation6], %s399
        %p401 = pneg %p85
        %p402 = pneg %p82
        %s403 = sand.u32 %s26, 1
        %s404 = scalar_lea.sflag [#allocation7], %s403
        %s405 = sand.u32 %s98, 1
        %s406 = smul.addr %s405, 2
        %s407 = scalar_lea.vmem [#allocation8], %s406
        %p408 = pneg %p111
        %p409 = pneg %p108
        %s410 = sand.u32 %s26, 1
        %s411 = scalar_lea.sflag [#allocation10], %s410
        %s412 = sand.u32 %s124, 1
        %s413 = smul.addr %s412, 256
        %s414 = scalar_lea.vmem [#allocation9], %s413
        %p415 = pneg %p137
        %p416 = pneg %p134
        %p417 = pneg %p158
        %p418 = pneg %p155
        %p419 = pneg %p179
        %p420 = pneg %p176
        %p421 = pneg %p200
        %p422 = pneg %p197
        %p423 = pneg %p226
        %p424 = pneg %p223
        %s425 = smul.u32 3, %s30
        %s426 = smul.u32 2, %s31
        %s427 = smul.u32 2, %s31
        %s428 = smul.u32 32, %s31
        %s429 = smul.u32 3, %s30
        %p430 = scmp.eq.s32.totalorder %s31, 0
        // Predicated region
        $region69: #{tpu_custom_call.1} parent=47 // pred_check
          %p431 = pneg %p430
        $region70: #{tpu_custom_call.1} parent=47 // pred_check_branch
          %433 = sbr.rel (%p431) target = $region72
        $region71: #{tpu_custom_call.1} parent=47 // pred_region
          %434 = vst [vmem:[#allocation2] sm:$0xff] 0.0
          %435 = vst [vmem:[#allocation2 + $0x8] sm:$0xff] 0.0
          %436 = vst [vmem:[#allocation2 + $0x10] sm:$0xff] 0.0
          %437 = vst [vmem:[#allocation2 + $0x18] sm:$0xff] 0.0
          %438 = vst [vmem:[#allocation2 + $0x20] sm:$0xff] 0.0
          %439 = vst [vmem:[#allocation2 + $0x28] sm:$0xff] 0.0
        $region72: #{tpu_custom_call.1} parent=47 // pred_fallthru
          _
        %v440 = vld [vmem:[#allocation3] sm:$0xff]
        %v441 = vld [vmem:[#allocation3 + $0x8] sm:$0xff]
        %v442 = vld [vmem:[#allocation3 + $0x10] sm:$0xff]
        %v443 = vld [vmem:[%s363] sm:$0xff]
        %v444 = vld [vmem:[%s363 + $0x8] sm:$0xff]
        %v445 = vld [vmem:[%s363 + $0x10] sm:$0xff]
        %v446 = vld [vmem:[%s363 + $0x18] sm:$0xff]
        %v447 = vld [vmem:[%s363 + $0x20] sm:$0xff]
        %v448 = vld [vmem:[%s363 + $0x28] sm:$0xff]
        %v449 = vld [vmem:[%s363 + $0x30] sm:$0xff]
        %v450 = vld [vmem:[%s363 + $0x38] sm:$0xff]
        %v451 = vld [vmem:[%s363 + $0x40] sm:$0xff]
        %v452 = vld [vmem:[%s363 + $0x48] sm:$0xff]
        %v453 = vld [vmem:[%s363 + $0x50] sm:$0xff]
        %v454 = vld [vmem:[%s363 + $0x58] sm:$0xff]
        %v455 = vld [vmem:[%s363 + $0x60] sm:$0xff]
        %v456 = vld [vmem:[%s363 + $0x68] sm:$0xff]
        %v457 = vld [vmem:[%s363 + $0x70] sm:$0xff]
        %v458 = vld [vmem:[%s363 + $0x78] sm:$0xff]
        %v459 = vld [vmem:[%s363 + $0x80] sm:$0xff]
        %v460 = vld [vmem:[%s363 + $0x88] sm:$0xff]
        %v461 = vld [vmem:[%s363 + $0x90] sm:$0xff]
        %v462 = vld [vmem:[%s363 + $0x98] sm:$0xff]
        %v463 = vld [vmem:[%s363 + $0xa0] sm:$0xff]
        %v464 = vld [vmem:[%s363 + $0xa8] sm:$0xff]
        %v465 = vld [vmem:[%s363 + $0xb0] sm:$0xff]
        %v466 = vld [vmem:[%s363 + $0xb8] sm:$0xff]
        %v467 = vld [vmem:[%s363 + $0xc0] sm:$0xff]
        %v468 = vld [vmem:[%s363 + $0xc8] sm:$0xff]
        %v469 = vld [vmem:[%s363 + $0xd0] sm:$0xff]
        %v470 = vld [vmem:[%s363 + $0xd8] sm:$0xff]
        %v471 = vld [vmem:[%s363 + $0xe0] sm:$0xff]
        %v472 = vld [vmem:[%s363 + $0xe8] sm:$0xff]
        %v473 = vld [vmem:[%s363 + $0xf0] sm:$0xff]
        %v474 = vld [vmem:[%s363 + $0xf8] sm:$0xff]
        %v475 = vld [vmem:[%s373] sm:$0x3]
        %v477 = vperm.slane %v475, 0
        %v478 = vperm.slane %v475, 1
        %v484 = vunpack.c.l.b16 %v440
        %v485 = vunpack.c.h.b16 %v440
        %v486 = vunpack.c.l.b16 %v441
        %v487 = vunpack.c.h.b16 %v441
        %v488 = vunpack.c.l.b16 %v442
        %v489 = vunpack.c.h.b16 %v442
        %v490 = vpack.c.b16 %v486, %v484
        %v491 = vpack.c.b16 %v487, %v485
        %v492 = vpack.c.b16 %v488, %v488
        %v493 = vpack.c.b16 %v489, %v489
        %v530 = vunpack.c.l.b16 %v443
        %v531 = vunpack.c.h.b16 %v443
        %v532 = vunpack.c.l.b16 %v444
        %v533 = vunpack.c.h.b16 %v444
        %v534 = vunpack.c.l.b16 %v445
        %v535 = vunpack.c.h.b16 %v445
        %v536 = vunpack.c.l.b16 %v446
        %v537 = vunpack.c.h.b16 %v446
        %v538 = vunpack.c.l.b16 %v447
        %v539 = vunpack.c.h.b16 %v447
        %v540 = vunpack.c.l.b16 %v448
        %v541 = vunpack.c.h.b16 %v448
        %v542 = vunpack.c.l.b16 %v449
        %v543 = vunpack.c.h.b16 %v449
        %v544 = vunpack.c.l.b16 %v450
        %v545 = vunpack.c.h.b16 %v450
        %v546 = vunpack.c.l.b16 %v451
        %v547 = vunpack.c.h.b16 %v451
        %v548 = vunpack.c.l.b16 %v452
        %v549 = vunpack.c.h.b16 %v452
        %v550 = vunpack.c.l.b16 %v453
        %v551 = vunpack.c.h.b16 %v453
        %v552 = vunpack.c.l.b16 %v454
        %v553 = vunpack.c.h.b16 %v454
        %v554 = vunpack.c.l.b16 %v455
        %v555 = vunpack.c.h.b16 %v455
        %v556 = vunpack.c.l.b16 %v456
        %v557 = vunpack.c.h.b16 %v456
        %v558 = vunpack.c.l.b16 %v457
        %v559 = vunpack.c.h.b16 %v457
        %v560 = vunpack.c.l.b16 %v458
        %v561 = vunpack.c.h.b16 %v458
        %v562 = vunpack.c.l.b16 %v459
        %v563 = vunpack.c.h.b16 %v459
        %v564 = vunpack.c.l.b16 %v460
        %v565 = vunpack.c.h.b16 %v460
        %v566 = vunpack.c.l.b16 %v461
        %v567 = vunpack.c.h.b16 %v461
        %v568 = vunpack.c.l.b16 %v462
        %v569 = vunpack.c.h.b16 %v462
        %v570 = vunpack.c.l.b16 %v463
        %v571 = vunpack.c.h.b16 %v463
        %v572 = vunpack.c.l.b16 %v464
        %v573 = vunpack.c.h.b16 %v464
        %v574 = vunpack.c.l.b16 %v465
        %v575 = vunpack.c.h.b16 %v465
        %v576 = vunpack.c.l.b16 %v466
        %v577 = vunpack.c.h.b16 %v466
        %v578 = vunpack.c.l.b16 %v467
        %v579 = vunpack.c.h.b16 %v467
        %v580 = vunpack.c.l.b16 %v468
        %v581 = vunpack.c.h.b16 %v468
        %v582 = vunpack.c.l.b16 %v469
        %v583 = vunpack.c.h.b16 %v469
        %v584 = vunpack.c.l.b16 %v470
        %v585 = vunpack.c.h.b16 %v470
        %v586 = vunpack.c.l.b16 %v471
        %v587 = vunpack.c.h.b16 %v471
        %v588 = vunpack.c.l.b16 %v472
        %v589 = vunpack.c.h.b16 %v472
        %v590 = vunpack.c.l.b16 %v473
        %v591 = vunpack.c.h.b16 %v473
        %v592 = vunpack.c.l.b16 %v474
        %v593 = vunpack.c.h.b16 %v474
        %v594 = vpack.c.b16 %v532, %v530
        %v595 = vpack.c.b16 %v533, %v531
        %v596 = vpack.c.b16 %v536, %v534
        %v597 = vpack.c.b16 %v537, %v535
        %v598 = vpack.c.b16 %v540, %v538
        %v599 = vpack.c.b16 %v541, %v539
        %v600 = vpack.c.b16 %v544, %v542
        %v601 = vpack.c.b16 %v545, %v543
        %v602 = vpack.c.b16 %v548, %v546
        %v603 = vpack.c.b16 %v549, %v547
        %v604 = vpack.c.b16 %v552, %v550
        %v605 = vpack.c.b16 %v553, %v551
        %v606 = vpack.c.b16 %v556, %v554
        %v607 = vpack.c.b16 %v557, %v555
        %v608 = vpack.c.b16 %v560, %v558
        %v609 = vpack.c.b16 %v561, %v559
        %v610 = vpack.c.b16 %v564, %v562
        %v611 = vpack.c.b16 %v565, %v563
        %v612 = vpack.c.b16 %v568, %v566
        %v613 = vpack.c.b16 %v569, %v567
        %v614 = vpack.c.b16 %v572, %v570
        %v615 = vpack.c.b16 %v573, %v571
        %v616 = vpack.c.b16 %v576, %v574
        %v617 = vpack.c.b16 %v577, %v575
        %v618 = vpack.c.b16 %v580, %v578
        %v619 = vpack.c.b16 %v581, %v579
        %v620 = vpack.c.b16 %v584, %v582
        %v621 = vpack.c.b16 %v585, %v583
        %v622 = vpack.c.b16 %v588, %v586
        %v623 = vpack.c.b16 %v589, %v587
        %v624 = vpack.c.b16 %v592, %v590
        %v625 = vpack.c.b16 %v593, %v591
        %658 = vmatpush.bf16.msra.mxu0 %v608
        %659 = vmatpush.bf16.msra.mxu0 %v606
        %660 = vmatpush.bf16.msra.mxu0 %v604
        %661 = vmatpush.bf16.msra.mxu0 %v602
        %662 = vmatpush.bf16.msra.mxu0 %v600
        %663 = vmatpush.bf16.msra.mxu0 %v598
        %664 = vmatpush.bf16.msra.mxu0 %v596
        %665 = vmatpush.bf16.msra.mxu0 %v594
        %666 = vmatmul.bf16.gmra.mxu0 %v490
        %v667 = vpop.f32.mrf.mxu0
        %v668 = vadd.f32 %v477, %v667
        %v669 = vpop.f32.mrf.mxu0
        %v670 = vadd.f32 %v477, %v669
        %671 = vmatmul.bf16.gmra.mxu0 %v492
        %v672 = vpop.f32.mrf.mxu0
        %v673 = vadd.f32 %v477, %v672
        %v674 = vpop.f32.mrf.mxu0
        %675 = vdwg.mxu0
        %676 = vmatpush.bf16.msra.mxu0 %v624
        %677 = vmatpush.bf16.msra.mxu0 %v622
        %678 = vmatpush.bf16.msra.mxu0 %v620
        %679 = vmatpush.bf16.msra.mxu0 %v618
        %680 = vmatpush.bf16.msra.mxu0 %v616
        %681 = vmatpush.bf16.msra.mxu0 %v614
        %682 = vmatpush.bf16.msra.mxu0 %v612
        %683 = vmatpush.bf16.msra.mxu0 %v610
        %684 = vmatmul.bf16.gmra.mxu0 %v491
        %v685 = vpop.f32.mrf.mxu0
        %v686 = vadd.f32 %v668, %v685
        %v687 = vpop.f32.mrf.mxu0
        %v688 = vadd.f32 %v670, %v687
        %689 = vmatmul.bf16.gmra.mxu0 %v493
        %v690 = vpop.f32.mrf.mxu0
        %v691 = vadd.f32 %v673, %v690
        %v692 = vpop.f32.mrf.mxu0
        %693 = vdwg.mxu0
        %694 = vmatpush.bf16.msra.mxu0 %v609
        %695 = vmatpush.bf16.msra.mxu0 %v607
        %696 = vmatpush.bf16.msra.mxu0 %v605
        %697 = vmatpush.bf16.msra.mxu0 %v603
        %698 = vmatpush.bf16.msra.mxu0 %v601
        %699 = vmatpush.bf16.msra.mxu0 %v599
        %700 = vmatpush.bf16.msra.mxu0 %v597
        %701 = vmatpush.bf16.msra.mxu0 %v595
        %702 = vmatmul.bf16.gmra.mxu0 %v490
        %v703 = vpop.f32.mrf.mxu0
        %v704 = vadd.f32 %v478, %v703
        %v705 = vpop.f32.mrf.mxu0
        %v706 = vadd.f32 %v478, %v705
        %707 = vmatmul.bf16.gmra.mxu0 %v492
        %v708 = vpop.f32.mrf.mxu0
        %v709 = vadd.f32 %v478, %v708
        %v710 = vpop.f32.mrf.mxu0
        %711 = vdwg.mxu0
        %712 = vmatpush.bf16.msra.mxu0 %v625
        %713 = vmatpush.bf16.msra.mxu0 %v623
        %714 = vmatpush.bf16.msra.mxu0 %v621
        %715 = vmatpush.bf16.msra.mxu0 %v619
        %716 = vmatpush.bf16.msra.mxu0 %v617
        %717 = vmatpush.bf16.msra.mxu0 %v615
        %718 = vmatpush.bf16.msra.mxu0 %v613
        %719 = vmatpush.bf16.msra.mxu0 %v611
        %720 = vmatmul.bf16.gmra.mxu0 %v491
        %v721 = vpop.f32.mrf.mxu0
        %v722 = vadd.f32 %v704, %v721
        %v723 = vpop.f32.mrf.mxu0
        %v724 = vadd.f32 %v706, %v723
        %725 = vmatmul.bf16.gmra.mxu0 %v493
        %v726 = vpop.f32.mrf.mxu0
        %v727 = vadd.f32 %v709, %v726
        %v728 = vpop.f32.mrf.mxu0
        %729 = vdwg.mxu0
        %v730 = vmul.f32 %v686, 0.5
        %v731 = vmul.f32 %v722, 0.5
        %v732 = vmul.f32 %v688, 0.5
        %v733 = vmul.f32 %v724, 0.5
        %v734 = vmul.f32 %v691, 0.5
        %v735 = vmul.f32 %v727, 0.5
        %v736 = vmul.f32 %v686, 0.044715
        %v737 = vmul.f32 %v722, 0.044715
        %v738 = vmul.f32 %v688, 0.044715
        %v739 = vmul.f32 %v724, 0.044715
        %v740 = vmul.f32 %v691, 0.044715
        %v741 = vmul.f32 %v727, 0.044715
        %v742 = vmul.f32 %v736, %v686
        %v743 = vmul.f32 %v737, %v722
        %v744 = vmul.f32 %v738, %v688
        %v745 = vmul.f32 %v739, %v724
        %v746 = vmul.f32 %v740, %v691
        %v747 = vmul.f32 %v741, %v727
        %v748 = vmul.f32 %v742, %v686
        %v749 = vmul.f32 %v743, %v722
        %v750 = vmul.f32 %v744, %v688
        %v751 = vmul.f32 %v745, %v724
        %v752 = vmul.f32 %v746, %v691
        %v753 = vmul.f32 %v747, %v727
        %v754 = vadd.f32 %v686, %v748
        %v755 = vadd.f32 %v722, %v749
        %v756 = vadd.f32 %v688, %v750
        %v757 = vadd.f32 %v724, %v751
        %v758 = vadd.f32 %v691, %v752
        %v759 = vadd.f32 %v727, %v753
        %v760 = vmul.f32 %v754, 0.7978846
        %v761 = vmul.f32 %v755, 0.7978846
        %v762 = vmul.f32 %v756, 0.7978846
        %v763 = vmul.f32 %v757, 0.7978846
        %v764 = vmul.f32 %v758, 0.7978846
        %v765 = vmul.f32 %v759, 0.7978846
        %v766 = vtanh.pop %v760
        %v767 = vtanh.pop %v761
        %v768 = vtanh.pop %v762
        %v769 = vtanh.pop %v763
        %v770 = vtanh.pop %v764
        %v771 = vtanh.pop %v765
        %v772 = vadd.f32 %v766, 1.0
        %v773 = vadd.f32 %v767, 1.0
        %v774 = vadd.f32 %v768, 1.0
        %v775 = vadd.f32 %v769, 1.0
        %v776 = vadd.f32 %v770, 1.0
        %v777 = vadd.f32 %v771, 1.0
        %v778 = vmul.f32 %v730, %v772
        %v779 = vmul.f32 %v731, %v773
        %v780 = vmul.f32 %v732, %v774
        %v781 = vmul.f32 %v733, %v775
        %v782 = vmul.f32 %v734, %v776
        %v783 = vmul.f32 %v735, %v777
        %v784 = vld [vmem:[#allocation2] sm:$0xff]
        %v785 = vld [vmem:[#allocation2 + $0x8] sm:$0xff]
        %v786 = vld [vmem:[#allocation2 + $0x10] sm:$0xff]
        %v787 = vld [vmem:[#allocation2 + $0x18] sm:$0xff]
        %v788 = vld [vmem:[#allocation2 + $0x20] sm:$0xff]
        %v789 = vld [vmem:[#allocation2 + $0x28] sm:$0xff]
        %v790 = vpack.c.bf16 %v780, %v778
        %v791 = vpack.c.bf16 %v781, %v779
        %v792 = vpack.c.bf16 %v782, %v782
        %v793 = vpack.c.bf16 %v783, %v783
        %v794 = vld [vmem:[%s383] sm:$0xff]
        %v795 = vld [vmem:[%s383 + $0x8] sm:$0xff]
        %v796 = vld [vmem:[%s383 + $0x10] sm:$0xff]
        %v797 = vld [vmem:[%s383 + $0x18] sm:$0xff]
        %v798 = vld [vmem:[%s383 + $0x20] sm:$0xff]
        %v799 = vld [vmem:[%s383 + $0x28] sm:$0xff]
        %v800 = vld [vmem:[%s383 + $0x30] sm:$0xff]
        %v801 = vld [vmem:[%s383 + $0x38] sm:$0xff]
        %v802 = vld [vmem:[%s383 + $0x40] sm:$0xff]
        %v803 = vld [vmem:[%s383 + $0x48] sm:$0xff]
        %v804 = vld [vmem:[%s383 + $0x50] sm:$0xff]
        %v805 = vld [vmem:[%s383 + $0x58] sm:$0xff]
        %v806 = vld [vmem:[%s383 + $0x60] sm:$0xff]
        %v807 = vld [vmem:[%s383 + $0x68] sm:$0xff]
        %v808 = vld [vmem:[%s383 + $0x70] sm:$0xff]
        %v809 = vld [vmem:[%s383 + $0x78] sm:$0xff]
        %v810 = vld [vmem:[%s383 + $0x80] sm:$0xff]
        %v811 = vld [vmem:[%s383 + $0x88] sm:$0xff]
        %v812 = vld [vmem:[%s383 + $0x90] sm:$0xff]
        %v813 = vld [vmem:[%s383 + $0x98] sm:$0xff]
        %v814 = vld [vmem:[%s383 + $0xa0] sm:$0xff]
        %v815 = vld [vmem:[%s383 + $0xa8] sm:$0xff]
        %v816 = vld [vmem:[%s383 + $0xb0] sm:$0xff]
        %v817 = vld [vmem:[%s383 + $0xb8] sm:$0xff]
        %v818 = vld [vmem:[%s383 + $0xc0] sm:$0xff]
        %v819 = vld [vmem:[%s383 + $0xc8] sm:$0xff]
        %v820 = vld [vmem:[%s383 + $0xd0] sm:$0xff]
        %v821 = vld [vmem:[%s383 + $0xd8] sm:$0xff]
        %v822 = vld [vmem:[%s383 + $0xe0] sm:$0xff]
        %v823 = vld [vmem:[%s383 + $0xe8] sm:$0xff]
        %v824 = vld [vmem:[%s383 + $0xf0] sm:$0xff]
        %v825 = vld [vmem:[%s383 + $0xf8] sm:$0xff]
        %v858 = vunpack.c.l.b16 %v794
        %v859 = vunpack.c.h.b16 %v794
        %v860 = vunpack.c.l.b16 %v795
        %v861 = vunpack.c.h.b16 %v795
        %v862 = vunpack.c.l.b16 %v796
        %v863 = vunpack.c.h.b16 %v796
        %v864 = vunpack.c.l.b16 %v797
        %v865 = vunpack.c.h.b16 %v797
        %v866 = vunpack.c.l.b16 %v798
        %v867 = vunpack.c.h.b16 %v798
        %v868 = vunpack.c.l.b16 %v799
        %v869 = vunpack.c.h.b16 %v799
        %v870 = vunpack.c.l.b16 %v800
        %v871 = vunpack.c.h.b16 %v800
        %v872 = vunpack.c.l.b16 %v801
        %v873 = vunpack.c.h.b16 %v801
        %v874 = vunpack.c.l.b16 %v802
        %v875 = vunpack.c.h.b16 %v802
        %v876 = vunpack.c.l.b16 %v803
        %v877 = vunpack.c.h.b16 %v803
        %v878 = vunpack.c.l.b16 %v804
        %v879 = vunpack.c.h.b16 %v804
        %v880 = vunpack.c.l.b16 %v805
        %v881 = vunpack.c.h.b16 %v805
        %v882 = vunpack.c.l.b16 %v806
        %v883 = vunpack.c.h.b16 %v806
        %v884 = vunpack.c.l.b16 %v807
        %v885 = vunpack.c.h.b16 %v807
        %v886 = vunpack.c.l.b16 %v808
        %v887 = vunpack.c.h.b16 %v808
        %v888 = vunpack.c.l.b16 %v809
        %v889 = vunpack.c.h.b16 %v809
        %v890 = vunpack.c.l.b16 %v810
        %v891 = vunpack.c.h.b16 %v810
        %v892 = vunpack.c.l.b16 %v811
        %v893 = vunpack.c.h.b16 %v811
        %v894 = vunpack.c.l.b16 %v812
        %v895 = vunpack.c.h.b16 %v812
        %v896 = vunpack.c.l.b16 %v813
        %v897 = vunpack.c.h.b16 %v813
        %v898 = vunpack.c.l.b16 %v814
        %v899 = vunpack.c.h.b16 %v814
        %v900 = vunpack.c.l.b16 %v815
        %v901 = vunpack.c.h.b16 %v815
        %v902 = vunpack.c.l.b16 %v816
        %v903 = vunpack.c.h.b16 %v816
        %v904 = vunpack.c.l.b16 %v817
        %v905 = vunpack.c.h.b16 %v817
        %v906 = vunpack.c.l.b16 %v818
        %v907 = vunpack.c.h.b16 %v818
        %v908 = vunpack.c.l.b16 %v819
        %v909 = vunpack.c.h.b16 %v819
        %v910 = vunpack.c.l.b16 %v820
        %v911 = vunpack.c.h.b16 %v820
        %v912 = vunpack.c.l.b16 %v821
        %v913 = vunpack.c.h.b16 %v821
        %v914 = vunpack.c.l.b16 %v822
        %v915 = vunpack.c.h.b16 %v822
        %v916 = vunpack.c.l.b16 %v823
        %v917 = vunpack.c.h.b16 %v823
        %v918 = vunpack.c.l.b16 %v824
        %v919 = vunpack.c.h.b16 %v824
        %v920 = vunpack.c.l.b16 %v825
        %v921 = vunpack.c.h.b16 %v825
        %v922 = vpack.c.b16 %v860, %v858
        %v923 = vpack.c.b16 %v861, %v859
        %v924 = vpack.c.b16 %v864, %v862
        %v925 = vpack.c.b16 %v865, %v863
        %v926 = vpack.c.b16 %v868, %v866
        %v927 = vpack.c.b16 %v869, %v867
        %v928 = vpack.c.b16 %v872, %v870
        %v929 = vpack.c.b16 %v873, %v871
        %v930 = vpack.c.b16 %v876, %v874
        %v931 = vpack.c.b16 %v877, %v875
        %v932 = vpack.c.b16 %v880, %v878
        %v933 = vpack.c.b16 %v881, %v879
        %v934 = vpack.c.b16 %v884, %v882
        %v935 = vpack.c.b16 %v885, %v883
        %v936 = vpack.c.b16 %v888, %v886
        %v937 = vpack.c.b16 %v889, %v887
        %v938 = vpack.c.b16 %v892, %v890
        %v939 = vpack.c.b16 %v893, %v891
        %v940 = vpack.c.b16 %v896, %v894
        %v941 = vpack.c.b16 %v897, %v895
        %v942 = vpack.c.b16 %v900, %v898
        %v943 = vpack.c.b16 %v901, %v899
        %v944 = vpack.c.b16 %v904, %v902
        %v945 = vpack.c.b16 %v905, %v903
        %v946 = vpack.c.b16 %v908, %v906
        %v947 = vpack.c.b16 %v909, %v907
        %v948 = vpack.c.b16 %v912, %v910
        %v949 = vpack.c.b16 %v913, %v911
        %v950 = vpack.c.b16 %v916, %v914
        %v951 = vpack.c.b16 %v917, %v915
        %v952 = vpack.c.b16 %v920, %v918
        %v953 = vpack.c.b16 %v921, %v919
        %986 = vmatpush.bf16.msra.mxu0 %v936
        %987 = vmatpush.bf16.msra.mxu0 %v934
        %988 = vmatpush.bf16.msra.mxu0 %v932
        %989 = vmatpush.bf16.msra.mxu0 %v930
        %990 = vmatpush.bf16.msra.mxu0 %v928
        %991 = vmatpush.bf16.msra.mxu0 %v926
        %992 = vmatpush.bf16.msra.mxu0 %v924
        %993 = vmatpush.bf16.msra.mxu0 %v922
        %994 = vmatmul.bf16.gmra.mxu0 %v790
        %v995 = vpop.f32.mrf.mxu0
        %v996 = vadd.f32 0.0, %v995
        %v997 = vpop.f32.mrf.mxu0
        %v998 = vadd.f32 0.0, %v997
        %999 = vmatmul.bf16.gmra.mxu0 %v792
        %v1000 = vpop.f32.mrf.mxu0
        %v1001 = vadd.f32 0.0, %v1000
        %v1002 = vpop.f32.mrf.mxu0
        %1003 = vdwg.mxu0
        %1004 = vmatpush.bf16.msra.mxu0 %v952
        %1005 = vmatpush.bf16.msra.mxu0 %v950
        %1006 = vmatpush.bf16.msra.mxu0 %v948
        %1007 = vmatpush.bf16.msra.mxu0 %v946
        %1008 = vmatpush.bf16.msra.mxu0 %v944
        %1009 = vmatpush.bf16.msra.mxu0 %v942
        %1010 = vmatpush.bf16.msra.mxu0 %v940
        %1011 = vmatpush.bf16.msra.mxu0 %v938
        %1012 = vmatmul.bf16.gmra.mxu0 %v791
        %v1013 = vpop.f32.mrf.mxu0
        %v1014 = vadd.f32 %v996, %v1013
        %v1015 = vpop.f32.mrf.mxu0
        %v1016 = vadd.f32 %v998, %v1015
        %1017 = vmatmul.bf16.gmra.mxu0 %v793
        %v1018 = vpop.f32.mrf.mxu0
        %v1019 = vadd.f32 %v1001, %v1018
        %v1020 = vpop.f32.mrf.mxu0
        %1021 = vdwg.mxu0
        %1022 = vmatpush.bf16.msra.mxu0 %v937
        %1023 = vmatpush.bf16.msra.mxu0 %v935
        %1024 = vmatpush.bf16.msra.mxu0 %v933
        %1025 = vmatpush.bf16.msra.mxu0 %v931
        %1026 = vmatpush.bf16.msra.mxu0 %v929
        %1027 = vmatpush.bf16.msra.mxu0 %v927
        %1028 = vmatpush.bf16.msra.mxu0 %v925
        %1029 = vmatpush.bf16.msra.mxu0 %v923
        %1030 = vmatmul.bf16.gmra.mxu0 %v790
        %v1031 = vpop.f32.mrf.mxu0
        %v1032 = vadd.f32 0.0, %v1031
        %v1033 = vpop.f32.mrf.mxu0
        %v1034 = vadd.f32 0.0, %v1033
        %1035 = vmatmul.bf16.gmra.mxu0 %v792
        %v1036 = vpop.f32.mrf.mxu0
        %v1037 = vadd.f32 0.0, %v1036
        %v1038 = vpop.f32.mrf.mxu0
        %1039 = vdwg.mxu0
        %1040 = vmatpush.bf16.msra.mxu0 %v953
        %1041 = vmatpush.bf16.msra.mxu0 %v951
        %1042 = vmatpush.bf16.msra.mxu0 %v949
        %1043 = vmatpush.bf16.msra.mxu0 %v947
        %1044 = vmatpush.bf16.msra.mxu0 %v945
        %1045 = vmatpush.bf16.msra.mxu0 %v943
        %1046 = vmatpush.bf16.msra.mxu0 %v941
        %1047 = vmatpush.bf16.msra.mxu0 %v939
        %1048 = vmatmul.bf16.gmra.mxu0 %v791
        %v1049 = vpop.f32.mrf.mxu0
        %v1050 = vadd.f32 %v1032, %v1049
        %v1051 = vpop.f32.mrf.mxu0
        %v1052 = vadd.f32 %v1034, %v1051
        %1053 = vmatmul.bf16.gmra.mxu0 %v793
        %v1054 = vpop.f32.mrf.mxu0
        %v1055 = vadd.f32 %v1037, %v1054
        %v1056 = vpop.f32.mrf.mxu0
        %1057 = vdwg.mxu0
        %v1058 = vadd.f32 %v784, %v1014
        %v1059 = vadd.f32 %v785, %v1050
        %v1060 = vadd.f32 %v786, %v1016
        %v1061 = vadd.f32 %v787, %v1052
        %v1062 = vadd.f32 %v788, %v1019
        %v1063 = vadd.f32 %v789, %v1055
        %1064 = vst [vmem:[#allocation2] sm:$0xff] %v1058
        %1065 = vst [vmem:[#allocation2 + $0x8] sm:$0xff] %v1059
        %1066 = vst [vmem:[#allocation2 + $0x10] sm:$0xff] %v1060
        %1067 = vst [vmem:[#allocation2 + $0x18] sm:$0xff] %v1061
        %1068 = vst [vmem:[#allocation2 + $0x20] sm:$0xff] %v1062
        %1069 = vst [vmem:[#allocation2 + $0x28] sm:$0xff] %v1063
        %p1070 = scmp.eq.s32.totalorder %s31, 1
        // Predicated region
        $region73: #{tpu_custom_call.1} parent=47 // pred_check
          %p1071 = pneg %p1070
        $region74: #{tpu_custom_call.1} parent=47 // pred_check_branch
          %1073 = sbr.rel (%p1071) target = $region76
        $region75: #{tpu_custom_call.1} parent=47 // pred_region
          %v1074 = vld [vmem:[#allocation2] sm:$0xff]
          %v1075 = vld [vmem:[#allocation2 + $0x8] sm:$0xff]
          %v1076 = vld [vmem:[#allocation2 + $0x10] sm:$0xff]
          %v1077 = vld [vmem:[#allocation2 + $0x18] sm:$0xff]
          %v1078 = vld [vmem:[#allocation2 + $0x20] sm:$0xff]
          %v1079 = vld [vmem:[#allocation2 + $0x28] sm:$0xff]
          %v1080 = vld [vmem:[%s4] sm:$0x3]
          %v1082 = vperm.slane %v1080, 0
          %v1083 = vperm.slane %v1080, 1
          %v1086 = vadd.f32 %v1074, %v1082
          %v1087 = vadd.f32 %v1075, %v1083
          %v1088 = vadd.f32 %v1076, %v1082
          %v1089 = vadd.f32 %v1077, %v1083
          %v1090 = vadd.f32 %v1078, %v1082
          %v1091 = vadd.f32 %v1079, %v1083
          %v1092 = vunpack.c.l.bf16 %v440
          %v1093 = vunpack.c.h.bf16 %v440
          %v1094 = vunpack.c.l.bf16 %v441
          %v1095 = vunpack.c.h.bf16 %v441
          %v1096 = vunpack.c.l.bf16 %v442
          %v1097 = vunpack.c.h.bf16 %v442
          %v1098 = vadd.f32 %v1086, %v1092
          %v1099 = vadd.f32 %v1087, %v1093
          %v1100 = vadd.f32 %v1088, %v1094
          %v1101 = vadd.f32 %v1089, %v1095
          %v1102 = vadd.f32 %v1090, %v1096
          %v1103 = vadd.f32 %v1091, %v1097
          %v1104 = vpack.c.bf16 %v1100, %v1098
          %v1105 = vpack.c.bf16 %v1101, %v1099
          %v1106 = vpack.c.bf16 %v1102, %v1102
          %v1107 = vpack.c.bf16 %v1103, %v1103
          %v1108 = vld [vmem:[#allocation11] sm:$0xf]
          %v1109 = vld [vmem:[#allocation11 + $0x4] sm:$0xf]
          %v1110 = vld [vmem:[#allocation11 + $0x8] sm:$0xf]
          %v1111 = vld [vmem:[#allocation11 + $0xc] sm:$0xf]
          %v1112 = vld [vmem:[#allocation11 + $0x10] sm:$0xf]
          %v1113 = vld [vmem:[#allocation11 + $0x14] sm:$0xf]
          %v1114 = vld [vmem:[#allocation11 + $0x18] sm:$0xf]
          %v1115 = vld [vmem:[#allocation11 + $0x1c] sm:$0xf]
          %v1116 = vld [vmem:[#allocation11 + $0x20] sm:$0xf]
          %v1117 = vld [vmem:[#allocation11 + $0x24] sm:$0xf]
          %v1118 = vld [vmem:[#allocation11 + $0x28] sm:$0xf]
          %v1119 = vld [vmem:[#allocation11 + $0x2c] sm:$0xf]
          %v1120 = vld [vmem:[#allocation11 + $0x30] sm:$0xf]
          %v1121 = vld [vmem:[#allocation11 + $0x34] sm:$0xf]
          %v1122 = vld [vmem:[#allocation11 + $0x38] sm:$0xf]
          %v1123 = vld [vmem:[#allocation11 + $0x3c] sm:$0xf]
          %v1124 = vld [vmem:[#allocation11 + $0x40] sm:$0xf]
          %v1125 = vld [vmem:[#allocation11 + $0x44] sm:$0xf]
          %v1126 = vld [vmem:[#allocation11 + $0x48] sm:$0xf]
          %v1127 = vld [vmem:[#allocation11 + $0x4c] sm:$0xf]
          %v1128 = vld [vmem:[#allocation11 + $0x50] sm:$0xf]
          %v1129 = vld [vmem:[#allocation11 + $0x54] sm:$0xf]
          %v1130 = vld [vmem:[#allocation11 + $0x58] sm:$0xf]
          %v1131 = vld [vmem:[#allocation11 + $0x5c] sm:$0xf]
          %v1132 = vld [vmem:[#allocation11 + $0x60] sm:$0xf]
          %v1133 = vld [vmem:[#allocation11 + $0x64] sm:$0xf]
          %v1134 = vld [vmem:[#allocation11 + $0x68] sm:$0xf]
          %v1135 = vld [vmem:[#allocation11 + $0x6c] sm:$0xf]
          %v1136 = vld [vmem:[#allocation11 + $0x70] sm:$0xf]
          %v1137 = vld [vmem:[#allocation11 + $0x74] sm:$0xf]
          %v1138 = vld [vmem:[#allocation11 + $0x78] sm:$0xf]
          %v1139 = vld [vmem:[#allocation11 + $0x7c] sm:$0xf]
          %v1140 = vld [vmem:[%s6] sm:$0x1]
          %v1142 = vperm.slane %v1140, 0
          %v1176 = vunpack.c.l.b16 %v1108
          %v1177 = vunpack.c.l.b16 %v1109
          %v1178 = vunpack.c.l.b16 %v1110
          %v1179 = vunpack.c.l.b16 %v1111
          %v1180 = vunpack.c.l.b16 %v1112
          %v1181 = vunpack.c.l.b16 %v1113
          %v1182 = vunpack.c.l.b16 %v1114
          %v1183 = vunpack.c.l.b16 %v1115
          %v1184 = vunpack.c.l.b16 %v1116
          %v1185 = vunpack.c.l.b16 %v1117
          %v1186 = vunpack.c.l.b16 %v1118
          %v1187 = vunpack.c.l.b16 %v1119
          %v1188 = vunpack.c.l.b16 %v1120
          %v1189 = vunpack.c.l.b16 %v1121
          %v1190 = vunpack.c.l.b16 %v1122
          %v1191 = vunpack.c.l.b16 %v1123
          %v1192 = vunpack.c.l.b16 %v1124
          %v1193 = vunpack.c.l.b16 %v1125
          %v1194 = vunpack.c.l.b16 %v1126
          %v1195 = vunpack.c.l.b16 %v1127
          %v1196 = vunpack.c.l.b16 %v1128
          %v1197 = vunpack.c.l.b16 %v1129
          %v1198 = vunpack.c.l.b16 %v1130
          %v1199 = vunpack.c.l.b16 %v1131
          %v1200 = vunpack.c.l.b16 %v1132
          %v1201 = vunpack.c.l.b16 %v1133
          %v1202 = vunpack.c.l.b16 %v1134
          %v1203 = vunpack.c.l.b16 %v1135
          %v1204 = vunpack.c.l.b16 %v1136
          %v1205 = vunpack.c.l.b16 %v1137
          %v1206 = vunpack.c.l.b16 %v1138
          %v1207 = vunpack.c.l.b16 %v1139
          %v1208 = vpack.c.b16 %v1177, %v1176
          %v1209 = vpack.c.b16 %v1179, %v1178
          %v1210 = vpack.c.b16 %v1181, %v1180
          %v1211 = vpack.c.b16 %v1183, %v1182
          %v1212 = vpack.c.b16 %v1185, %v1184
          %v1213 = vpack.c.b16 %v1187, %v1186
          %v1214 = vpack.c.b16 %v1189, %v1188
          %v1215 = vpack.c.b16 %v1191, %v1190
          %v1216 = vpack.c.b16 %v1193, %v1192
          %v1217 = vpack.c.b16 %v1195, %v1194
          %v1218 = vpack.c.b16 %v1197, %v1196
          %v1219 = vpack.c.b16 %v1199, %v1198
          %v1220 = vpack.c.b16 %v1201, %v1200
          %v1221 = vpack.c.b16 %v1203, %v1202
          %v1222 = vpack.c.b16 %v1205, %v1204
          %v1223 = vpack.c.b16 %v1207, %v1206
          %1240 = vmatpush.bf16.msra.mxu0 %v1215
          %1241 = vmatpush.bf16.msra.mxu0 %v1214
          %1242 = vmatpush.bf16.msra.mxu0 %v1213
          %1243 = vmatpush.bf16.msra.mxu0 %v1212
          %1244 = vmatpush.bf16.msra.mxu0 %v1211
          %1245 = vmatpush.bf16.msra.mxu0 %v1210
          %1246 = vmatpush.bf16.msra.mxu0 %v1209
          %1247 = vmatpush.bf16.msra.mxu0 %v1208
          %1248 = vmatmul.bf16.gmra.mxu0 %v1104
          %v1249 = vpop.f32.mrf.mxu0
          %v1250 = vadd.f32 %v1142, %v1249
          %v1251 = vpop.f32.mrf.mxu0
          %v1252 = vadd.f32 %v1142, %v1251
          %1253 = vmatmul.bf16.gmra.mxu0 %v1106
          %v1254 = vpop.f32.mrf.mxu0
          %v1255 = vadd.f32 %v1142, %v1254
          %v1256 = vpop.f32.mrf.mxu0
          %1257 = vdwg.mxu0
          %1258 = vmatpush.bf16.msra.mxu0 %v1223
          %1259 = vmatpush.bf16.msra.mxu0 %v1222
          %1260 = vmatpush.bf16.msra.mxu0 %v1221
          %1261 = vmatpush.bf16.msra.mxu0 %v1220
          %1262 = vmatpush.bf16.msra.mxu0 %v1219
          %1263 = vmatpush.bf16.msra.mxu0 %v1218
          %1264 = vmatpush.bf16.msra.mxu0 %v1217
          %1265 = vmatpush.bf16.msra.mxu0 %v1216
          %1266 = vmatmul.bf16.gmra.mxu0 %v1105
          %v1267 = vpop.f32.mrf.mxu0
          %v1268 = vadd.f32 %v1250, %v1267
          %v1269 = vpop.f32.mrf.mxu0
          %v1270 = vadd.f32 %v1252, %v1269
          %1271 = vmatmul.bf16.gmra.mxu0 %v1107
          %v1272 = vpop.f32.mrf.mxu0
          %v1273 = vadd.f32 %v1255, %v1272
          %v1274 = vpop.f32.mrf.mxu0
          %1275 = vdwg.mxu0
          %1276 = vst [vmem:[#allocation12] sm:$0xff] %v1268
          %1277 = vst [vmem:[#allocation12 + $0x8] sm:$0xff] %v1270
          %1278 = vst [vmem:[#allocation12 + $0x10] sm:$0xff] %v1273
        $region76: #{tpu_custom_call.1} parent=47 // pred_fallthru
          _
        // Predicated region
        $region77: #{tpu_custom_call.1} parent=47 // pred_check
          %p1279 = pneg %p223
        $region78: #{tpu_custom_call.1} parent=47 // pred_check_branch
          %1281 = sbr.rel (%p1279) target = $region80
        $region79: #{tpu_custom_call.1} parent=47 // pred_region
          %s1282 = smul.u32 3, %s30
          %1284 = vsyncadd [#allocation5], 0
          %s1285 = smul.addr %s1282, 8
          %s1286 = scalar_lea.hbm %s7, %s1285
          %s1287 = sshll.u32 [#allocation12], 4
          %s1288 = int_to_ptr.vmem [resolvable:$true] %s1287
          %s1289 = sshll.u32 %s1286, 4
          %s1290 = int_to_ptr.hbm [resolvable:$true] %s1289
          %1295 = dma.vmem_to_hbm [thread:$0]  %s1288, 384, %s1290, [#allocation5], 128, 128, 8
        $region80: #{tpu_custom_call.1} parent=47 // pred_fallthru
          _
        // Predicated region
        $region81: #{tpu_custom_call.1} parent=47 // pred_check
          %p1296 = pneg %p223
        $region82: #{tpu_custom_call.1} parent=47 // pred_check_branch
          %1298 = sbr.rel (%p1296) target = $region84
        $region83: #{tpu_custom_call.1} parent=47 // pred_region
          %1300 = dma.done [#allocation5], 384
        $region84: #{tpu_custom_call.1} parent=47 // pred_fallthru
          _
      $region48: #{tpu_custom_call.1} parent=5 // pred_fallthru
        _
      %p1301 = scmp.le.s32.totalorder 2, %s21
      // Predicated region
      $region85: #{tpu_custom_call.1} parent=5 // pred_check
        %p1302 = pneg %p1301
      $region86: #{tpu_custom_call.1} parent=5 // pred_check_branch
        %1304 = sbr.rel (%p1302) target = $region88
      $region87: #{tpu_custom_call.1} parent=5 // pred_region
        %s1305 = ssub.s32 %s21, 2
      $region88: #{tpu_custom_call.1} parent=5 // pred_fallthru
        _
    $region6: #{tpu_custom_call.1} parent=1 // loop_footer
      %s25 = sadd.s32 1, %s21
    $region7: #{tpu_custom_call.1} parent=1 // loop_footer_branch
      %20 = sbr.rel target = $region3
    $region8: #{tpu_custom_call.1} parent=1 // loop_exit
      _
    %1306 = vsyncpa [#allocation4], 1
    %s1307 = scalar_lea.sflag [#allocation4], 1
    %1308 = vsyncpa %s1307, 1
    %1309 = vsyncpa [#allocation7], 1
    %s1310 = scalar_lea.sflag [#allocation7], 1
    %1311 = vsyncpa %s1310, 1
    %1312 = vsyncpa [#allocation10], 1
    %s1313 = scalar_lea.sflag [#allocation10], 1
    %1314 = vsyncpa %s1313, 1
    %1315 = vsyncpa [#allocation5], 1
    %s1316 = scalar_lea.sflag [#allocation5], 1
    %1317 = vsyncpa %s1316, 1

</llo_original>
